<compile_context>
chip_gen: v6e
topology: v6e:2x2x1
jax: 0.10.0
libtpu: 0.0.40
codegen_flags: <defaults>
</compile_context>

<pallas_src>
import jax
import jax.numpy as jnp
from jax.experimental import pallas as pl
from jax.experimental.pallas import tpu as pltpu


def _round_up(x, m):
    return ((x + m - 1) // m) * m


# -----------------------------------------------------------------------------
# Pallas kernel: fused  W1x@X (+ W1e@Xe or VPU outer product) -> +shift -> ReLU
#                       -> W2 @ h
# All operands are channels-on-sublanes / pixels-on-lanes.
# -----------------------------------------------------------------------------
def _make_seg_head_kernel(depth_outer_product):
    def kernel(x_ref, xe_ref, w1x_ref, w1e_ref, shift_ref, w2_ref, o_ref):
        # x_ref:     (bb, Cx, T)     RGB pixel tile (pixels on lanes)
        # xe_ref:    (bb, Ce, T)     depth pixel tile
        # w1x_ref:   (HIDDEN, Cx)    first-layer weights (BN scale pre-folded)
        # w1e_ref:   (HIDDEN, Ce)
        # shift_ref: (HIDDEN, 1)     folded BatchNorm shift (bias)
        # w2_ref:    (NC, HIDDEN)
        # o_ref:     (bb, NC, T)
        w1x = w1x_ref[...]
        w1e = w1e_ref[...]
        shift = shift_ref[...]
        w2 = w2_ref[...]
        for b in range(x_ref.shape[0]):         # small static batch-block unroll
            h = jnp.dot(w1x, x_ref[b], preferred_element_type=jnp.float32)
            if depth_outer_product:
                # Ce == 1: (HIDDEN,1) * (1,T) broadcast on the VPU — avoids a
                # second MXU push for a K=1 contraction.
                h = h + w1e * xe_ref[b]
            else:
                h = h + jnp.dot(w1e, xe_ref[b],
                                preferred_element_type=jnp.float32)
            h = jnp.maximum(h + shift, 0.0)
            o_ref[b] = jnp.dot(w2, h,
                               preferred_element_type=jnp.float32
                               ).astype(o_ref.dtype)
    return kernel


def seg_head_pallas(x_flat, xe_flat, w1x_t, w1e_t, bn_shift, w2_t, *,
                    tile_p=16384, out_dtype=jnp.float32):
    """Fused RGB-D 1x1-conv segmentation head.

    x_flat:  (B, Cx, P)  RGB,   pixels on last (lane) axis
    xe_flat: (B, Ce, P)  depth
    returns: (B, NUM_CLASSES, P) logits (out_dtype)
    """
    B, cx, P = x_flat.shape
    _, ce, _ = xe_flat.shape
    hidden = w1x_t.shape[0]
    num_classes = w2_t.shape[0]

    # ---- block selection ----------------------------------------------------
    # Lane-dense pixel tile (multiple of 128). No host-side padding; Pallas
    # handles the ragged last tile (OOB writes dropped).
    p_block = min(_round_up(tile_p, 128), _round_up(P, 128))
    grid_p = pl.cdiv(P, p_block)

    # Small-image case: whole image fits one pixel tile -> process several
    # images per grid step to amortize per-step overhead, but keep >=2 grid
    # steps when possible (v7x dual TensorCore / megacore sharding).
    bb = 1
    if grid_p == 1 and B > 1:
        bb = max(1, min(B, tile_p // p_block))
        if pl.cdiv(B, bb) < 2:
            bb = max(1, pl.cdiv(B, 2))
    grid_b = pl.cdiv(B, bb)
    grid = (grid_b, grid_p)

    # ---- explicit VMEM budget (double-buffered tiles + f32 h temp) -----------
    def _sub(c):  # sublane padding for f32 tiles
        return _round_up(max(int(c), 1), 8)

    out_bytes = jnp.dtype(out_dtype).itemsize
    per_step = (2 * bb * _sub(cx) * p_block * 4          # x  (double-buffered)
                + 2 * bb * _sub(ce) * p_block * 4        # xe (double-buffered)
                + bb * _sub(hidden) * p_block * 4        # implicit f32 h temp
                + 2 * bb * _sub(num_classes) * p_block * out_bytes)  # output
    vmem_limit = int(min(64 << 20, max(32 << 20, per_step + (6 << 20))))

    kernel = _make_seg_head_kernel(depth_outer_product=(ce == 1))

    out = pl.pallas_call(
        kernel,
        out_shape=jax.ShapeDtypeStruct((B, num_classes, P), out_dtype),
        grid_spec=pltpu.PrefetchScalarGridSpec(
            num_scalar_prefetch=0,
            grid=grid,
            in_specs=[
                pl.BlockSpec((bb, cx, p_block), lambda i, j: (i, 0, j)),
                pl.BlockSpec((bb, ce, p_block), lambda i, j: (i, 0, j)),
                pl.BlockSpec((hidden, cx), lambda i, j: (0, 0)),          # resident
                pl.BlockSpec((hidden, ce), lambda i, j: (0, 0)),          # resident
                pl.BlockSpec((hidden, 1), lambda i, j: (0, 0)),           # resident
                pl.BlockSpec((num_classes, hidden), lambda i, j: (0, 0)), # resident
            ],
            out_specs=pl.BlockSpec((bb, num_classes, p_block),
                                   lambda i, j: (i, 0, j)),
        ),
        compiler_params=pltpu.CompilerParams(
            dimension_semantics=("parallel", "parallel"),
            vmem_limit_bytes=vmem_limit),
    )(x_flat, xe_flat, w1x_t, w1e_t, bn_shift, w2_t)
    return out


# -----------------------------------------------------------------------------
# ModelWrapper.forward equivalent (glue in plain JAX, hot path in Pallas)
# -----------------------------------------------------------------------------
class ModelWrapperPallas:
    def __init__(self, x_channels=3, x_e_channels=1, hidden=32, num_classes=8,
                 out_dtype=jnp.float32, key=jax.random.PRNGKey(0)):
        self.x_channels = x_channels
        self.x_e_channels = x_e_channels
        self.is_rgb_model = False  # synthetic fusion model consumes both x and x_e
        self.num_classes = num_classes
        self.out_dtype = out_dtype
        cin = x_channels + x_e_channels

        k1, k2, k3, k4 = jax.random.split(key, 4)
        # deterministic synthetic parameters
        w1 = jax.random.normal(k1, (cin, hidden), jnp.float32) / jnp.sqrt(
            jnp.float32(cin))
        w2 = jax.random.normal(k2, (hidden, num_classes), jnp.float32) / jnp.sqrt(
            jnp.float32(hidden))
        # BatchNorm2d (inference), folded: gamma=1, beta=0, synthetic stats
        gamma = jnp.ones((hidden,), jnp.float32)
        beta = jnp.zeros((hidden,), jnp.float32)
        running_mean = 0.1 * jax.random.normal(k3, (hidden,), jnp.float32)
        running_var = 1.0 + 0.05 * jax.random.uniform(k4, (hidden,), jnp.float32)
        eps = 1e-5
        scale = gamma / jnp.sqrt(running_var + eps)
        shift = beta - running_mean * scale

        # Transposed (channels-on-sublanes) layout with BN scale folded into W1.
        w1s_t = scale[:, None] * w1.T                  # (hidden, cin)
        self.w1x_t = w1s_t[:, :x_channels]             # (hidden, Cx)
        self.w1e_t = w1s_t[:, x_channels:]             # (hidden, Ce)
        self.bn_shift = shift.reshape(hidden, 1)       # (hidden, 1)
        self.w2_t = w2.T                               # (num_classes, hidden)

    def __call__(self, x, x_e):
        # x:   NCHW [B, Cx, H, W] (or [Cx, H, W])
        # x_e: NCHW [B, Ce, H, W] (or [Ce, H, W])
        if x.ndim == 3:
            x = x[None]
        if x_e.ndim == 3:
            x_e = x_e[None]

        if self.is_rgb_model:
            # TODO(synk): RGB-only backbones (DepthAnything / RefineNet) are
            # external; the synthetic head here is a fusion model, so this
            # branch is never taken with the default configuration.
            raise NotImplementedError("RGB-only backbone path not implemented")

        B, cx, H, W = x.shape
        ce = x_e.shape[1]
        # NCHW -> (B, C, H*W) is a free view: pixels land on the lane axis,
        # no transpose and no channel-concat materialization.
        x_flat = x.reshape(B, cx, H * W)
        xe_flat = x_e.reshape(B, ce, H * W)

        logits = seg_head_pallas(x_flat, xe_flat, self.w1x_t, self.w1e_t,
                                 self.bn_shift, self.w2_t,
                                 out_dtype=self.out_dtype)  # (B, nc, H*W)

        # (B, num_classes, H*W) -> NCHW [B, num_classes, H, W] (free view)
        return logits.reshape(B, self.num_classes, H, W)


if __name__ == "__main__":
    key = jax.random.PRNGKey(0)
    kx, ke, kp = jax.random.split(key, 3)

    B, H, W = 2, 16, 16
    x = jax.random.normal(kx, (B, 3, H, W), jnp.float32)     # RGB, NCHW
    x_e = jax.random.normal(ke, (B, 1, H, W), jnp.float32)   # depth, NCHW

    model = ModelWrapperPallas(x_channels=3, x_e_channels=1,
                               hidden=32, num_classes=8, key=kp)

    out = model(x, x_e)
    out = jax.block_until_ready(out)
    assert out.shape == (B, 8, H, W), out.shape

    # Pure-JAX reference of the same synthetic head (concat -> 1x1 -> BN -> ReLU -> 1x1)
    fused = jnp.concatenate([x, x_e], axis=1)                        # (B, 4, H, W)
    xp = jnp.transpose(fused, (0, 2, 3, 1)).reshape(-1, 4)           # (P, 4)
    w1_full = jnp.concatenate([model.w1x_t, model.w1e_t], axis=1).T  # (4, hidden), scale folded
    h_ref = jnp.maximum(xp @ w1_full + model.bn_shift[:, 0][None, :], 0.0)
    ref = (h_ref @ model.w2_t.T).reshape(B, H, W, 8).transpose(0, 3, 1, 2)
    assert jnp.allclose(out, ref, atol=1e-4, rtol=1e-4)

    print("KERNEL_OK")
</pallas_src>

<mosaic_0001>
module attributes {stable_mosaic.version = 11 : i64} {
  func.func @kernel(%arg0: i32, %arg1: i32, %arg2: memref<1x3x256xf32, #tpu.memory_space<vmem>>, %arg3: memref<1x1x256xf32, #tpu.memory_space<vmem>>, %arg4: memref<32x3xf32, #tpu.memory_space<vmem>>, %arg5: memref<32x1xf32, #tpu.memory_space<vmem>>, %arg6: memref<32x1xf32, #tpu.memory_space<vmem>>, %arg7: memref<8x32xf32, #tpu.memory_space<vmem>>, %arg8: memref<1x8x256xf32, #tpu.memory_space<vmem>>) attributes {dimension_semantics = [#tpu.dimension_semantics<parallel>, #tpu.dimension_semantics<parallel>], iteration_bounds = array<i64: 2, 1>, scalar_prefetch = 0 : i64, scratch_operands = 0 : i64, tpu.core_type = #tpu.core_type<tc>, window_params = [{transform_indices = @transform_0, window_bounds = array<i64: 1, 3, 256>}, {transform_indices = @transform_1, window_bounds = array<i64: 1, 1, 256>}, {pipeline_mode = #tpu.pipeline_mode<synchronous>, transform_indices = @transform_2, window_bounds = array<i64: 32, 3>}, {pipeline_mode = #tpu.pipeline_mode<synchronous>, transform_indices = @transform_3, window_bounds = array<i64: 32, 1>}, {pipeline_mode = #tpu.pipeline_mode<synchronous>, transform_indices = @transform_4, window_bounds = array<i64: 32, 1>}, {pipeline_mode = #tpu.pipeline_mode<synchronous>, transform_indices = @transform_5, window_bounds = array<i64: 8, 32>}, {transform_indices = @transform_6, window_bounds = array<i64: 1, 8, 256>}]} {
    %c0 = arith.constant 0 : index
    %c0_0 = arith.constant 0 : index
    %0 = vector.load %arg4[%c0, %c0_0] : memref<32x3xf32, #tpu.memory_space<vmem>>, vector<32x3xf32>
    %c0_1 = arith.constant 0 : index
    %c0_2 = arith.constant 0 : index
    %1 = vector.load %arg5[%c0_1, %c0_2] : memref<32x1xf32, #tpu.memory_space<vmem>>, vector<32x1xf32>
    %c0_3 = arith.constant 0 : index
    %c0_4 = arith.constant 0 : index
    %2 = vector.load %arg6[%c0_3, %c0_4] : memref<32x1xf32, #tpu.memory_space<vmem>>, vector<32x1xf32>
    %c0_5 = arith.constant 0 : index
    %c0_6 = arith.constant 0 : index
    %3 = vector.load %arg7[%c0_5, %c0_6] : memref<8x32xf32, #tpu.memory_space<vmem>>, vector<8x32xf32>
    %c0_7 = arith.constant 0 : index
    %c0_8 = arith.constant 0 : index
    %c0_9 = arith.constant 0 : index
    %4 = vector.load %arg2[%c0_7, %c0_8, %c0_9] : memref<1x3x256xf32, #tpu.memory_space<vmem>>, vector<1x3x256xf32>
    %5 = vector.shape_cast %4 : vector<1x3x256xf32> to vector<3x256xf32>
    %cst = arith.constant dense<0.000000e+00> : vector<32x256xf32>
    %6 = tpu.matmul %0, %5, %cst {dimension_numbers = #tpu.dot_dimension_numbers<[1], [0], [0], [1], [0, 0, 1, 1], [], []>} : vector<32x3xf32>, vector<3x256xf32>, vector<32x256xf32> -> vector<32x256xf32>
    %c0_10 = arith.constant 0 : index
    %c0_11 = arith.constant 0 : index
    %c0_12 = arith.constant 0 : index
    %7 = vector.load %arg3[%c0_10, %c0_11, %c0_12] : memref<1x1x256xf32, #tpu.memory_space<vmem>>, vector<1x1x256xf32>
    %8 = vector.shape_cast %7 : vector<1x1x256xf32> to vector<1x256xf32>
    %9 = vector.broadcast %1 : vector<32x1xf32> to vector<32x256xf32>
    %10 = vector.broadcast %8 : vector<1x256xf32> to vector<32x256xf32>
    %11 = arith.mulf %9, %10 : vector<32x256xf32>
    %12 = arith.addf %6, %11 : vector<32x256xf32>
    %13 = vector.broadcast %2 : vector<32x1xf32> to vector<32x256xf32>
    %14 = arith.addf %12, %13 : vector<32x256xf32>
    %cst_13 = arith.constant 0.000000e+00 : f32
    %15 = vector.broadcast %cst_13 : f32 to vector<32x256xf32>
    %16 = arith.maximumf %14, %15 : vector<32x256xf32>
    %cst_14 = arith.constant dense<0.000000e+00> : vector<8x256xf32>
    %17 = tpu.matmul %3, %16, %cst_14 {dimension_numbers = #tpu.dot_dimension_numbers<[1], [0], [0], [1], [0, 0, 1, 1], [], []>} : vector<8x32xf32>, vector<32x256xf32>, vector<8x256xf32> -> vector<8x256xf32>
    %c0_15 = arith.constant 0 : index
    %c0_16 = arith.constant 0 : index
    %c0_17 = arith.constant 0 : index
    %18 = vector.load %arg8[%c0_15, %c0_16, %c0_17] : memref<1x8x256xf32, #tpu.memory_space<vmem>>, vector<1x8x256xf32>
    %19 = vector.shape_cast %18 : vector<1x8x256xf32> to vector<8x256xf32>
    %20 = vector.shape_cast %17 : vector<8x256xf32> to vector<1x8x256xf32>
    tpu.vector_store %arg8[%c0_15, %c0_16, %c0_17], %20 {strides = array<i32>} : memref<1x8x256xf32, #tpu.memory_space<vmem>>, vector<1x8x256xf32>,
    return
  }
  func.func @transform_0(%arg0: i32, %arg1: i32) -> (i32, i32, i32) {
    %c0_i32 = arith.constant 0 : i32
    %c0_i32_0 = arith.constant 0 : i32
    return %arg0, %c0_i32, %arg1 : i32, i32, i32
  }
  func.func @transform_1(%arg0: i32, %arg1: i32) -> (i32, i32, i32) {
    %c0_i32 = arith.constant 0 : i32
    %c0_i32_0 = arith.constant 0 : i32
    return %arg0, %c0_i32, %arg1 : i32, i32, i32
  }
  func.func @transform_2(%arg0: i32, %arg1: i32) -> (i32, i32) {
    %c0_i32 = arith.constant 0 : i32
    %c0_i32_0 = arith.constant 0 : i32
    %c0_i32_1 = arith.constant 0 : i32
    return %c0_i32, %c0_i32_0 : i32, i32
  }
  func.func @transform_3(%arg0: i32, %arg1: i32) -> (i32, i32) {
    %c0_i32 = arith.constant 0 : i32
    %c0_i32_0 = arith.constant 0 : i32
    %c0_i32_1 = arith.constant 0 : i32
    return %c0_i32, %c0_i32_0 : i32, i32
  }
  func.func @transform_4(%arg0: i32, %arg1: i32) -> (i32, i32) {
    %c0_i32 = arith.constant 0 : i32
    %c0_i32_0 = arith.constant 0 : i32
    %c0_i32_1 = arith.constant 0 : i32
    return %c0_i32, %c0_i32_0 : i32, i32
  }
  func.func @transform_5(%arg0: i32, %arg1: i32) -> (i32, i32) {
    %c0_i32 = arith.constant 0 : i32
    %c0_i32_0 = arith.constant 0 : i32
    %c0_i32_1 = arith.constant 0 : i32
    return %c0_i32, %c0_i32_0 : i32, i32
  }
  func.func @transform_6(%arg0: i32, %arg1: i32) -> (i32, i32, i32) {
    %c0_i32 = arith.constant 0 : i32
    %c0_i32_0 = arith.constant 0 : i32
    return %arg0, %c0_i32, %arg1 : i32, i32, i32
  }
}

</mosaic_0001>

<llo_original>
// kernel: tpu_custom_call.1
$region0: #{tpu_custom_call.1}
  #allocation0 [shape = 'u32[]', space=smem, size = 0x4, offset = 0x4, fixed_abs, tag = 'smem constant byte address 0x4 - core index']
  #allocation1 [shape = 'u32[144,128]{1,0:T(1,128)}', space=vmem, size = 0x12000, scoped, tag = 'internal scratch']
  %s0 = inlined_call_operand.vmem [shape: f32[2,3,256], index: 0, kind: input, shape index: {}]
  %s1 = inlined_call_operand.vmem [shape: f32[2,1,256], index: 1, kind: input, shape index: {}]
  %s2 = inlined_call_operand.vmem [shape: f32[32,3], index: 2, kind: input, shape index: {}]
  %s3 = inlined_call_operand.vmem [shape: f32[32,1], index: 3, kind: input, shape index: {}]
  %s4 = inlined_call_operand.vmem [shape: f32[32,1], index: 4, kind: input, shape index: {}]
  %s5 = inlined_call_operand.vmem [shape: f32[8,32], index: 5, kind: input, shape index: {}]
  %s6 = inlined_call_operand.hbm [shape: f32[2,8,256], index: 6, kind: output, shape index: {}]
  %s7 = sld [smem:[#allocation0]]
  $region57: #{tpu_custom_call.1} parent=0
    _
  %s9 = ssub.s32 1, %s7
  %s10 = scalar_select 0, %s9, %s7
  $region1: #{tpu_custom_call.1} parent=0
    #allocation2 [shape = 'u8[16384]{0}', space=vmem, size = 0x4000, scoped, tag = 'output window, operand 0']
    #allocation3 [shape = 's32[2]{0}', space=sflag, size = 0x8, scoped, tag = 'scoped memory for tpu_custom_call.1']
    %11 = vsyncpa [#allocation3], 0
    %s12 = scalar_lea.sflag [#allocation3], 1
    %13 = vsyncpa %s12, 0
    loop: start=0, step=1, limit=4
    $region2: #{tpu_custom_call.1} parent=1 // loop_pre_header
      _
    $region3: #{tpu_custom_call.1} parent=1 // loop_header
      %s15 = sphi 0, %s19
      %p16 = scmp.ge.s32.totalorder %s15, 4
      %s22 = sphi 0, %s34
      %s23 = sphi 0, %s30
      %s24 = sphi 0, %s22
      %s25 = sphi 0, %s23
      %s26 = sphi 0, %s24
      %s27 = sphi 0, %s25
      %s39 = sphi 0, %s41
      %s42 = sphi 0, %s39
      %s43 = sphi 0, %s42
      %s59 = sphi 0, %s43
      %s67 = sphi 0, %s69
      %s70 = sphi 0, %s67
      %s71 = sphi 0, %s70
      %s87 = sphi 0, %s71
      %s91 = sphi 0, %s91
      %s93 = sphi 0, %s91
      %s94 = sphi 0, %s93
      %s108 = sphi 0, %s94
      %s112 = sphi 0, %s112
      %s114 = sphi 0, %s112
      %s115 = sphi 0, %s114
      %s129 = sphi 0, %s115
      %s133 = sphi 0, %s133
      %s135 = sphi 0, %s133
      %s136 = sphi 0, %s135
      %s150 = sphi 0, %s136
      %s154 = sphi 0, %s154
      %s156 = sphi 0, %s154
      %s157 = sphi 0, %s156
      %s171 = sphi 0, %s157
      %s179 = sphi 0, %s181
      %s182 = sphi 0, %s179
      %s183 = sphi 0, %s182
      %s199 = sphi 0, %s183
    $region4: #{tpu_custom_call.1} parent=1 // loop_header_branch
      %18 = sbr.rel (%p16) target = $region8
    $region5: #{tpu_custom_call.1} parent=1 // loop_body
      %s20 = ssub.s32 %s15, 1
      %s21 = ssub.s32 %s15, 2
      %s28 = sadd.s32 1, %s23
      %p29 = scmp.ge.s32.totalorder %s28, 1
      %s30 = scalar_select %p29, 0, %s28
      %s31 = sadd.s32 1, %s22
      %s32 = scalar_select %p29, %s31, %s22
      %p33 = scmp.ge.s32.totalorder %s32, 2
      %s34 = scalar_select %p33, 0, %s32
      %s35 = ssub.s32 %s22, %s34
      %s36 = ssub.s32 %s23, %s30
      %s37 = sor.u32 %s35, %s36
      %p38 = scmp.eq.s32.totalorder %s37, 0
      %s40 = sadd.s32 %s39, 1
      %s41 = scalar_select %p38, %s39, %s40
      %p44 = pneg %p38
      %p45 = scmp.eq.s32.totalorder %s15, 1
      %p46 = por %p44, %p45
      %p47 = scmp.ne.s32.totalorder %s39, %s42
      %p48 = scmp.eq.s32.totalorder %s15, 0
      %p49 = por %p47, %p48
      %p50 = scmp.ne.s32.totalorder %s39, %s42
      %p51 = scmp.eq.s32.totalorder %s20, 1
      %p52 = por %p50, %p51
      %p53 = scmp.ne.s32.totalorder %s42, %s43
      %p54 = scmp.eq.s32.totalorder %s20, 0
      %p55 = por %p53, %p54
      %p56 = scmp.ne.s32.totalorder %s42, %s43
      %p57 = scmp.eq.s32.totalorder %s21, 1
      %p58 = por %p56, %p57
      %p60 = scmp.ne.s32.totalorder %s43, %s59
      %p61 = scmp.eq.s32.totalorder %s21, 0
      %p62 = por %p60, %p61
      %s63 = ssub.s32 %s22, %s34
      %s64 = ssub.s32 %s23, %s30
      %s65 = sor.u32 %s63, %s64
      %p66 = scmp.eq.s32.totalorder %s65, 0
      %s68 = sadd.s32 %s67, 1
      %s69 = scalar_select %p66, %s67, %s68
      %p72 = pneg %p66
      %p73 = scmp.eq.s32.totalorder %s15, 1
      %p74 = por %p72, %p73
      %p75 = scmp.ne.s32.totalorder %s67, %s70
      %p76 = scmp.eq.s32.totalorder %s15, 0
      %p77 = por %p75, %p76
      %p78 = scmp.ne.s32.totalorder %s67, %s70
      %p79 = scmp.eq.s32.totalorder %s20, 1
      %p80 = por %p78, %p79
      %p81 = scmp.ne.s32.totalorder %s70, %s71
      %p82 = scmp.eq.s32.totalorder %s20, 0
      %p83 = por %p81, %p82
      %p84 = scmp.ne.s32.totalorder %s70, %s71
      %p85 = scmp.eq.s32.totalorder %s21, 1
      %p86 = por %p84, %p85
      %p88 = scmp.ne.s32.totalorder %s71, %s87
      %p89 = scmp.eq.s32.totalorder %s21, 0
      %p90 = por %p88, %p89
      %s92 = sadd.s32 %s91, 1
      %p95 = scmp.eq.s32.totalorder %s15, 1
      %p96 = scmp.ne.s32.totalorder %s91, %s93
      %p97 = scmp.eq.s32.totalorder %s15, 0
      %p98 = por %p96, %p97
      %p99 = scmp.ne.s32.totalorder %s91, %s93
      %p100 = scmp.eq.s32.totalorder %s20, 1
      %p101 = por %p99, %p100
      %p102 = scmp.ne.s32.totalorder %s93, %s94
      %p103 = scmp.eq.s32.totalorder %s20, 0
      %p104 = por %p102, %p103
      %p105 = scmp.ne.s32.totalorder %s93, %s94
      %p106 = scmp.eq.s32.totalorder %s21, 1
      %p107 = por %p105, %p106
      %p109 = scmp.ne.s32.totalorder %s94, %s108
      %p110 = scmp.eq.s32.totalorder %s21, 0
      %p111 = por %p109, %p110
      %s113 = sadd.s32 %s112, 1
      %p116 = scmp.eq.s32.totalorder %s15, 1
      %p117 = scmp.ne.s32.totalorder %s112, %s114
      %p118 = scmp.eq.s32.totalorder %s15, 0
      %p119 = por %p117, %p118
      %p120 = scmp.ne.s32.totalorder %s112, %s114
      %p121 = scmp.eq.s32.totalorder %s20, 1
      %p122 = por %p120, %p121
      %p123 = scmp.ne.s32.totalorder %s114, %s115
      %p124 = scmp.eq.s32.totalorder %s20, 0
      %p125 = por %p123, %p124
      %p126 = scmp.ne.s32.totalorder %s114, %s115
      %p127 = scmp.eq.s32.totalorder %s21, 1
      %p128 = por %p126, %p127
      %p130 = scmp.ne.s32.totalorder %s115, %s129
      %p131 = scmp.eq.s32.totalorder %s21, 0
      %p132 = por %p130, %p131
      %s134 = sadd.s32 %s133, 1
      %p137 = scmp.eq.s32.totalorder %s15, 1
      %p138 = scmp.ne.s32.totalorder %s133, %s135
      %p139 = scmp.eq.s32.totalorder %s15, 0
      %p140 = por %p138, %p139
      %p141 = scmp.ne.s32.totalorder %s133, %s135
      %p142 = scmp.eq.s32.totalorder %s20, 1
      %p143 = por %p141, %p142
      %p144 = scmp.ne.s32.totalorder %s135, %s136
      %p145 = scmp.eq.s32.totalorder %s20, 0
      %p146 = por %p144, %p145
      %p147 = scmp.ne.s32.totalorder %s135, %s136
      %p148 = scmp.eq.s32.totalorder %s21, 1
      %p149 = por %p147, %p148
      %p151 = scmp.ne.s32.totalorder %s136, %s150
      %p152 = scmp.eq.s32.totalorder %s21, 0
      %p153 = por %p151, %p152
      %s155 = sadd.s32 %s154, 1
      %p158 = scmp.eq.s32.totalorder %s15, 1
      %p159 = scmp.ne.s32.totalorder %s154, %s156
      %p160 = scmp.eq.s32.totalorder %s15, 0
      %p161 = por %p159, %p160
      %p162 = scmp.ne.s32.totalorder %s154, %s156
      %p163 = scmp.eq.s32.totalorder %s20, 1
      %p164 = por %p162, %p163
      %p165 = scmp.ne.s32.totalorder %s156, %s157
      %p166 = scmp.eq.s32.totalorder %s20, 0
      %p167 = por %p165, %p166
      %p168 = scmp.ne.s32.totalorder %s156, %s157
      %p169 = scmp.eq.s32.totalorder %s21, 1
      %p170 = por %p168, %p169
      %p172 = scmp.ne.s32.totalorder %s157, %s171
      %p173 = scmp.eq.s32.totalorder %s21, 0
      %p174 = por %p172, %p173
      %s175 = ssub.s32 %s22, %s34
      %s176 = ssub.s32 %s23, %s30
      %s177 = sor.u32 %s175, %s176
      %p178 = scmp.eq.s32.totalorder %s177, 0
      %s180 = sadd.s32 %s179, 1
      %s181 = scalar_select %p178, %s179, %s180
      %p184 = pneg %p178
      %p185 = scmp.eq.s32.totalorder %s15, 1
      %p186 = por %p184, %p185
      %p187 = scmp.ne.s32.totalorder %s179, %s182
      %p188 = scmp.eq.s32.totalorder %s15, 0
      %p189 = por %p187, %p188
      %p190 = scmp.ne.s32.totalorder %s179, %s182
      %p191 = scmp.eq.s32.totalorder %s20, 1
      %p192 = por %p190, %p191
      %p193 = scmp.ne.s32.totalorder %s182, %s183
      %p194 = scmp.eq.s32.totalorder %s20, 0
      %p195 = por %p193, %p194
      %p196 = scmp.ne.s32.totalorder %s182, %s183
      %p197 = scmp.eq.s32.totalorder %s21, 1
      %p198 = por %p196, %p197
      %p200 = scmp.ne.s32.totalorder %s183, %s199
      %p201 = scmp.eq.s32.totalorder %s21, 0
      %p202 = por %p200, %p201
      %p203 = scmp.le.s32.totalorder 1, %s15
      %p204 = scmp.lt.s32.totalorder %s15, 3
      %p205 = pnand %p203, %p204
      %p206 = pneg %p205
      // Predicated region
      $region9: #{tpu_custom_call.1} parent=5 // pred_check
        _
      $region10: #{tpu_custom_call.1} parent=5 // pred_check_branch
        %208 = sbr.rel (%p205) target = $region12
      $region11: #{tpu_custom_call.1} parent=5 // pred_region
        %s209 = ssub.s32 %s15, 1
        // Predicated region
        $region13: #{tpu_custom_call.1} parent=11 // pred_check
          %p210 = pneg %p104
        $region14: #{tpu_custom_call.1} parent=11 // pred_check_branch
          %212 = sbr.rel (%p210) target = $region16
        $region15: #{tpu_custom_call.1} parent=11 // pred_region
          _
        $region16: #{tpu_custom_call.1} parent=11 // pred_fallthru
          _
        // Predicated region
        $region17: #{tpu_custom_call.1} parent=11 // pred_check
          %p213 = pneg %p125
        $region18: #{tpu_custom_call.1} parent=11 // pred_check_branch
          %215 = sbr.rel (%p213) target = $region20
        $region19: #{tpu_custom_call.1} parent=11 // pred_region
          _
        $region20: #{tpu_custom_call.1} parent=11 // pred_fallthru
          _
        // Predicated region
        $region21: #{tpu_custom_call.1} parent=11 // pred_check
          %p216 = pneg %p146
        $region22: #{tpu_custom_call.1} parent=11 // pred_check_branch
          %218 = sbr.rel (%p216) target = $region24
        $region23: #{tpu_custom_call.1} parent=11 // pred_region
          _
        $region24: #{tpu_custom_call.1} parent=11 // pred_fallthru
          _
        // Predicated region
        $region25: #{tpu_custom_call.1} parent=11 // pred_check
          %p219 = pneg %p167
        $region26: #{tpu_custom_call.1} parent=11 // pred_check_branch
          %221 = sbr.rel (%p219) target = $region28
        $region27: #{tpu_custom_call.1} parent=11 // pred_region
          _
        $region28: #{tpu_custom_call.1} parent=11 // pred_fallthru
          _
      $region12: #{tpu_custom_call.1} parent=5 // pred_fallthru
        _
      %p222 = scmp.lt.s32.totalorder %s15, 2
      // Predicated region
      $region29: #{tpu_custom_call.1} parent=5 // pred_check
        %p223 = pneg %p222
      $region30: #{tpu_custom_call.1} parent=5 // pred_check_branch
        %225 = sbr.rel (%p223) target = $region32
      $region31: #{tpu_custom_call.1} parent=5 // pred_region
        // Predicated region
        $region33: #{tpu_custom_call.1} parent=31 // pred_check
          %p226 = pneg %p49
        $region34: #{tpu_custom_call.1} parent=31 // pred_check_branch
          %228 = sbr.rel (%p226) target = $region36
        $region35: #{tpu_custom_call.1} parent=31 // pred_region
          %s229 = smul.u32 2, %s23
          %p230 = scmp.lt.s32.totalorder %s22, 1
          %s231 = scalar_select %p230, %s22, 1
          %p232 = scmp.lt.s32.totalorder %s229, 1
          %s233 = scalar_select %p232, %s229, 1
          %s234 = smul.addr %s231, 2
          %s235 = sadd.s32 %s233, %s234
          %s236 = smul.addr %s235, 4
          %s237 = scalar_lea.vmem %s0, %s236
          %s238 = smul.u32 2, %s23
        $region36: #{tpu_custom_call.1} parent=31 // pred_fallthru
          _
        // Predicated region
        $region37: #{tpu_custom_call.1} parent=31 // pred_check
          %p239 = pneg %p77
        $region38: #{tpu_custom_call.1} parent=31 // pred_check_branch
          %241 = sbr.rel (%p239) target = $region40
        $region39: #{tpu_custom_call.1} parent=31 // pred_region
          %s242 = smul.u32 2, %s23
          %p243 = scmp.lt.s32.totalorder %s22, 1
          %s244 = scalar_select %p243, %s22, 1
          %p245 = scmp.lt.s32.totalorder %s242, 1
          %s246 = scalar_select %p245, %s242, 1
          %s247 = smul.addr %s244, 2
          %s248 = sadd.s32 %s246, %s247
          %s249 = scalar_lea.vmem %s1, %s248
          %s250 = smul.u32 2, %s23
        $region40: #{tpu_custom_call.1} parent=31 // pred_fallthru
          _
      $region32: #{tpu_custom_call.1} parent=5 // pred_fallthru
        _
      %p251 = scmp.le.s32.totalorder 1, %s15
      %p252 = scmp.lt.s32.totalorder %s15, 3
      %p253 = pnand %p251, %p252
      %p254 = pneg %p253
      // Predicated region
      $region41: #{tpu_custom_call.1} parent=5 // pred_check
        _
      $region42: #{tpu_custom_call.1} parent=5 // pred_check_branch
        %256 = sbr.rel (%p253) target = $region44
      $region43: #{tpu_custom_call.1} parent=5 // pred_region
        %s257 = ssub.s32 %s15, 1
        %s258 = smul.u32 2, %s25
        %p259 = scmp.lt.s32.totalorder %s24, 1
        %s260 = scalar_select %p259, %s24, 1
        %p261 = scmp.lt.s32.totalorder %s258, 1
        %s262 = scalar_select %p261, %s258, 1
        %s263 = smul.addr %s260, 2
        %s264 = sadd.s32 %s262, %s263
        %s265 = smul.addr %s264, 4
        %s266 = scalar_lea.vmem %s0, %s265
        %p267 = pneg %p55
        %p268 = pneg %p52
        %s269 = smul.u32 2, %s25
        %p270 = scmp.lt.s32.totalorder %s24, 1
        %s271 = scalar_select %p270, %s24, 1
        %p272 = scmp.lt.s32.totalorder %s269, 1
        %s273 = scalar_select %p272, %s269, 1
        %s274 = smul.addr %s271, 2
        %s275 = sadd.s32 %s273, %s274
        %s276 = scalar_lea.vmem %s1, %s275
        %p277 = pneg %p83
        %p278 = pneg %p80
        %p279 = pneg %p104
        %p280 = pneg %p101
        %p281 = pneg %p125
        %p282 = pneg %p122
        %p283 = pneg %p146
        %p284 = pneg %p143
        %p285 = pneg %p167
        %p286 = pneg %p164
        %p287 = pneg %p195
        %p288 = pneg %p192
        %s289 = sand.u32 %s182, 1
        %s290 = scalar_lea.sflag [#allocation3], %s289
        %s291 = sand.u32 %s182, 1
        %s292 = smul.addr %s291, 16
        %s293 = scalar_lea.vmem [#allocation2], %s292
        %s294 = smul.u32 2, %s25
        %p295 = scmp.lt.s32.totalorder %s24, 1
        %s296 = scalar_select %p295, %s24, 1
        %p297 = scmp.lt.s32.totalorder %s294, 1
        %s298 = scalar_select %p297, %s294, 1
        %s299 = smul.addr %s296, 2
        %s300 = sadd.s32 %s298, %s299
        %s301 = smul.addr %s300, 4
        %s302 = scalar_lea.vmem %s0, %s301
        %s303 = smul.u32 2, %s25
        %s304 = smul.u32 2, %s25
        %p305 = scmp.lt.s32.totalorder %s24, 1
        %s306 = scalar_select %p305, %s24, 1
        %p307 = scmp.lt.s32.totalorder %s304, 1
        %s308 = scalar_select %p307, %s304, 1
        %s309 = smul.addr %s306, 2
        %s310 = sadd.s32 %s308, %s309
        %s311 = scalar_lea.vmem %s1, %s310
        %s312 = smul.u32 2, %s25
        %s313 = smul.u32 2, %s25
        %v314 = vld [vmem:[%s2] sm:$0xff]
        %v315 = vld [vmem:[%s2 + $0x8] sm:$0xff]
        %v316 = vld [vmem:[%s2 + $0x10] sm:$0xff]
        %v317 = vld [vmem:[%s2 + $0x18] sm:$0xff]
        %v318 = vld [vmem:[%s3] sm:$0xff]
        %v319 = vld [vmem:[%s3 + $0x8] sm:$0xff]
        %v320 = vld [vmem:[%s3 + $0x10] sm:$0xff]
        %v321 = vld [vmem:[%s3 + $0x18] sm:$0xff]
        %v322 = vld [vmem:[%s4] sm:$0xff]
        %v323 = vld [vmem:[%s4 + $0x8] sm:$0xff]
        %v324 = vld [vmem:[%s4 + $0x10] sm:$0xff]
        %v325 = vld [vmem:[%s4 + $0x18] sm:$0xff]
        %v326 = vld [vmem:[%s5] sm:$0xff]
        %v327 = vld [vmem:[%s302] sm:$0x77]
        %v328 = vld [vmem:[%s311] sm:$0x3]
        %330 = vset.pattern.permute.xlu0 0
        %331 = vperm.xlu0 %330, %v318
        %v332 = vpop.permute.xlu0 %331
        %335 = vset.pattern.permute.xlu0 0
        %336 = vperm.xlu0 %335, %v319
        %v337 = vpop.permute.xlu0 %336
        %340 = vset.pattern.permute.xlu0 0
        %341 = vperm.xlu0 %340, %v320
        %v342 = vpop.permute.xlu0 %341
        %345 = vset.pattern.permute.xlu0 0
        %346 = vperm.xlu0 %345, %v321
        %v347 = vpop.permute.xlu0 %346
        %v350 = vlaneseq
        %v351 = vshrl.u32 %v350, 7
        %v352 = vsub.s32 0, %v351
        %v353 = vrot.slane %v328, %v352
        %v354 = vlaneseq
        %v355 = vshrl.u32 %v354, 7
        %v356 = vsub.s32 1, %v355
        %v357 = vrot.slane %v328, %v356
        %v360 = vmul.f32 %v332, %v353
        %v361 = vmul.f32 %v332, %v357
        %v362 = vmul.f32 %v337, %v353
        %v363 = vmul.f32 %v337, %v357
        %v364 = vmul.f32 %v342, %v353
        %v365 = vmul.f32 %v342, %v357
        %v366 = vmul.f32 %v347, %v353
        %v367 = vmul.f32 %v347, %v357
        %v369 = vcombine.high %v327, %v327
        %vm370 = vcmask 23552
        %v372 = vsel %vm370, %v314, 0
        %v375 = vsel %vm370, %v315, 0
        %v378 = vsel %vm370, %v316, 0
        %v381 = vsel %vm370, %v317, 0
        %vm383 = vcmask 1042432
        %v384 = vsel %vm383, %v327, 0
        %v386 = vsel %vm383, %v369, 0
        %388 = vmatprep.subr.mxu0 0.0
        %389 = vmatpush1.msra.mxu0 0.0
        %390 = vmatprep.subr.mxu0 0.0
        %391 = vmatpush1.msra.mxu0 0.0
        %392 = vmatprep.subr.mxu0 0.0
        %393 = vmatpush1.msra.mxu0 0.0
        %394 = vmatprep.subr.mxu0 0.0
        %395 = vmatpush1.msra.mxu0 0.0
        %396 = vmatprep.subr.mxu0 0.0
        %397 = vmatpush1.msra.mxu0 0.0
        %398 = vmatprep.subr.mxu0 0.0
        %399 = vmatpush1.msra.mxu0 0.0
        %400 = vmatprep.subr.mxu0 0.0
        %401 = vmatpush1.msra.mxu0 0.0
        %402 = vmatprep.subr.mxu0 0.0
        %403 = vmatpush1.msra.mxu0 0.0
        %404 = vmatprep.subr.mxu0 0.0
        %405 = vmatpush1.msra.mxu0 0.0
        %406 = vmatprep.subr.mxu0 0.0
        %407 = vmatpush1.msra.mxu0 0.0
        %408 = vmatprep.subr.mxu0 0.0
        %409 = vmatpush1.msra.mxu0 0.0
        %410 = vmatprep.subr.mxu0 0.0
        %411 = vmatpush1.msra.mxu0 0.0
        %412 = vmatprep.subr.mxu0 0.0
        %413 = vmatpush1.msra.mxu0 0.0
        %414 = vmatprep.subr.mxu0 0.0
        %415 = vmatpush1.msra.mxu0 0.0
        %416 = vmatprep.subr.mxu0 0.0
        %417 = vmatpush1.msra.mxu0 0.0
        %418 = vmatprep.subr.mxu0 %v386
        %419 = vmatpush1.msra.mxu0 %v384
        %420 = vmatprep.subr.mxu0 0.0
        %421 = vmatpush2.msra.mxu0 0.0
        %422 = vmatprep.subr.mxu0 0.0
        %423 = vmatpush2.msra.mxu0 0.0
        %424 = vmatprep.subr.mxu0 0.0
        %425 = vmatpush2.msra.mxu0 0.0
        %426 = vmatprep.subr.mxu0 0.0
        %427 = vmatpush2.msra.mxu0 0.0
        %428 = vmatprep.subr.mxu0 0.0
        %429 = vmatpush2.msra.mxu0 0.0
        %430 = vmatprep.subr.mxu0 0.0
        %431 = vmatpush2.msra.mxu0 0.0
        %432 = vmatprep.subr.mxu0 0.0
        %433 = vmatpush2.msra.mxu0 0.0
        %434 = vmatprep.subr.mxu0 0.0
        %435 = vmatpush2.msra.mxu0 0.0
        %436 = vmatprep.subr.mxu0 0.0
        %437 = vmatpush2.msra.mxu0 0.0
        %438 = vmatprep.subr.mxu0 0.0
        %439 = vmatpush2.msra.mxu0 0.0
        %440 = vmatprep.subr.mxu0 0.0
        %441 = vmatpush2.msra.mxu0 0.0
        %442 = vmatprep.subr.mxu0 0.0
        %443 = vmatpush2.msra.mxu0 0.0
        %444 = vmatprep.subr.mxu0 0.0
        %445 = vmatpush2.msra.mxu0 0.0
        %446 = vmatprep.subr.mxu0 0.0
        %447 = vmatpush2.msra.mxu0 0.0
        %448 = vmatprep.subr.mxu0 0.0
        %449 = vmatpush2.msra.mxu0 0.0
        %450 = vmatprep.subr.mxu0 0.0
        %451 = vmatpush2.msra.mxu0 0.0
        %452 = vmatprep.mubr.f32.mxu0 0.0
        %453 = vmatmul.mubr.f32.gmra.mxu0 %v372
        %v454 = vpop.f32.mrf.mxu0
        %v455 = vadd.f32 %v360, %v454
        %v456 = vpop.f32.mrf.mxu0
        %v457 = vadd.f32 %v361, %v456
        %458 = vmatprep.mubr.f32.mxu0 0.0
        %459 = vmatmul.mubr.f32.gmra.mxu0 %v375
        %v460 = vpop.f32.mrf.mxu0
        %v461 = vadd.f32 %v362, %v460
        %v462 = vpop.f32.mrf.mxu0
        %v463 = vadd.f32 %v363, %v462
        %464 = vmatprep.mubr.f32.mxu0 0.0
        %465 = vmatmul.mubr.f32.gmra.mxu0 %v378
        %v466 = vpop.f32.mrf.mxu0
        %v467 = vadd.f32 %v364, %v466
        %v468 = vpop.f32.mrf.mxu0
        %v469 = vadd.f32 %v365, %v468
        %470 = vmatprep.mubr.f32.mxu0 0.0
        %471 = vmatmul.mubr.f32.gmra.mxu0 %v381
        %v472 = vpop.f32.mrf.mxu0
        %v473 = vadd.f32 %v366, %v472
        %v474 = vpop.f32.mrf.mxu0
        %v475 = vadd.f32 %v367, %v474
        %476 = vdwg.mxu0
        %478 = vset.pattern.permute.xlu0 0
        %479 = vperm.xlu0 %478, %v322
        %v480 = vpop.permute.xlu0 %479
        %483 = vset.pattern.permute.xlu0 0
        %484 = vperm.xlu0 %483, %v323
        %v485 = vpop.permute.xlu0 %484
        %488 = vset.pattern.permute.xlu0 0
        %489 = vperm.xlu0 %488, %v324
        %v490 = vpop.permute.xlu0 %489
        %493 = vset.pattern.permute.xlu0 0
        %494 = vperm.xlu0 %493, %v325
        %v495 = vpop.permute.xlu0 %494
        %v497 = vadd.f32 %v455, %v480
        %v498 = vadd.f32 %v457, %v480
        %v499 = vadd.f32 %v461, %v485
        %v500 = vadd.f32 %v463, %v485
        %v501 = vadd.f32 %v467, %v490
        %v502 = vadd.f32 %v469, %v490
        %v503 = vadd.f32 %v473, %v495
        %v504 = vadd.f32 %v475, %v495
        %v505 = vmax.f32 %v497, 0.0
        %v506 = vmax.f32 %v498, 0.0
        %v507 = vmax.f32 %v499, 0.0
        %v508 = vmax.f32 %v500, 0.0
        %v509 = vmax.f32 %v501, 0.0
        %v510 = vmax.f32 %v502, 0.0
        %v511 = vmax.f32 %v503, 0.0
        %v512 = vmax.f32 %v504, 0.0
        %vm513 = vcmask 261120
        %v515 = vsel %vm513, %v326, 0
        %517 = vmatprep.subr.mxu0 0.0
        %518 = vmatpush1.msra.mxu0 0.0
        %519 = vmatprep.subr.mxu0 0.0
        %520 = vmatpush1.msra.mxu0 0.0
        %521 = vmatprep.subr.mxu0 0.0
        %522 = vmatpush1.msra.mxu0 0.0
        %523 = vmatprep.subr.mxu0 0.0
        %524 = vmatpush1.msra.mxu0 0.0
        %525 = vmatprep.subr.mxu0 0.0
        %526 = vmatpush1.msra.mxu0 0.0
        %527 = vmatprep.subr.mxu0 0.0
        %528 = vmatpush1.msra.mxu0 0.0
        %529 = vmatprep.subr.mxu0 0.0
        %530 = vmatpush1.msra.mxu0 0.0
        %531 = vmatprep.subr.mxu0 0.0
        %532 = vmatpush1.msra.mxu0 0.0
        %533 = vmatprep.subr.mxu0 0.0
        %534 = vmatpush1.msra.mxu0 0.0
        %535 = vmatprep.subr.mxu0 0.0
        %536 = vmatpush1.msra.mxu0 0.0
        %537 = vmatprep.subr.mxu0 0.0
        %538 = vmatpush1.msra.mxu0 0.0
        %539 = vmatprep.subr.mxu0 0.0
        %540 = vmatpush1.msra.mxu0 0.0
        %541 = vmatprep.subr.mxu0 %v512
        %542 = vmatpush1.msra.mxu0 %v511
        %543 = vmatprep.subr.mxu0 %v510
        %544 = vmatpush1.msra.mxu0 %v509
        %545 = vmatprep.subr.mxu0 %v508
        %546 = vmatpush1.msra.mxu0 %v507
        %547 = vmatprep.subr.mxu0 %v506
        %548 = vmatpush1.msra.mxu0 %v505
        %549 = vmatprep.subr.mxu0 0.0
        %550 = vmatpush2.msra.mxu0 0.0
        %551 = vmatprep.subr.mxu0 0.0
        %552 = vmatpush2.msra.mxu0 0.0
        %553 = vmatprep.subr.mxu0 0.0
        %554 = vmatpush2.msra.mxu0 0.0
        %555 = vmatprep.subr.mxu0 0.0
        %556 = vmatpush2.msra.mxu0 0.0
        %557 = vmatprep.subr.mxu0 0.0
        %558 = vmatpush2.msra.mxu0 0.0
        %559 = vmatprep.subr.mxu0 0.0
        %560 = vmatpush2.msra.mxu0 0.0
        %561 = vmatprep.subr.mxu0 0.0
        %562 = vmatpush2.msra.mxu0 0.0
        %563 = vmatprep.subr.mxu0 0.0
        %564 = vmatpush2.msra.mxu0 0.0
        %565 = vmatprep.subr.mxu0 0.0
        %566 = vmatpush2.msra.mxu0 0.0
        %567 = vmatprep.subr.mxu0 0.0
        %568 = vmatpush2.msra.mxu0 0.0
        %569 = vmatprep.subr.mxu0 0.0
        %570 = vmatpush2.msra.mxu0 0.0
        %571 = vmatprep.subr.mxu0 0.0
        %572 = vmatpush2.msra.mxu0 0.0
        %573 = vmatprep.subr.mxu0 0.0
        %574 = vmatpush2.msra.mxu0 0.0
        %575 = vmatprep.subr.mxu0 0.0
        %576 = vmatpush2.msra.mxu0 0.0
        %577 = vmatprep.subr.mxu0 0.0
        %578 = vmatpush2.msra.mxu0 0.0
        %579 = vmatprep.subr.mxu0 0.0
        %580 = vmatpush2.msra.mxu0 0.0
        %581 = vmatprep.mubr.f32.mxu0 0.0
        %582 = vmatmul.mubr.f32.gmra.mxu0 %v515
        %v583 = vpop.f32.mrf.mxu0
        %v584 = vadd.f32 0.0, %v583
        %v585 = vpop.f32.mrf.mxu0
        %v586 = vadd.f32 0.0, %v585
        %587 = vdwg.mxu0
        %588 = vst [vmem:[%s293] sm:$0xff] %v584
        %589 = vst [vmem:[%s293 + $0x8] sm:$0xff] %v586
        %s590 = sand.u32 %s182, 1
        %s591 = scalar_lea.sflag [#allocation3], %s590
        %s592 = sand.u32 %s182, 1
        %s593 = smul.addr %s592, 16
        %s594 = scalar_lea.vmem [#allocation2], %s593
        // Predicated region
        $region45: #{tpu_custom_call.1} parent=43 // pred_check
          %p595 = pneg %p192
        $region46: #{tpu_custom_call.1} parent=43 // pred_check_branch
          %597 = sbr.rel (%p595) target = $region48
        $region47: #{tpu_custom_call.1} parent=43 // pred_region
          %s598 = smul.u32 2, %s25
          %s600 = ssub.s32 256, 256
          %601 = vsyncadd %s591, %s600
          %s602 = smul.addr %s24, 2
          %s603 = sadd.s32 %s598, %s602
          %s604 = smul.addr %s603, 128
          %s605 = scalar_lea.hbm %s6, %s604
          %s607 = sshll.u32 %s594, 4
          %s608 = int_to_ptr.vmem [resolvable:$true] %s607
          %610 = dma.vmem_to_hbm [thread:$0]  %s608, 256, %s605, %s591
        $region48: #{tpu_custom_call.1} parent=43 // pred_fallthru
          _
      $region44: #{tpu_custom_call.1} parent=5 // pred_fallthru
        _
      %p611 = scmp.le.s32.totalorder 2, %s15
      // Predicated region
      $region49: #{tpu_custom_call.1} parent=5 // pred_check
        %p612 = pneg %p611
      $region50: #{tpu_custom_call.1} parent=5 // pred_check_branch
        %614 = sbr.rel (%p612) target = $region52
      $region51: #{tpu_custom_call.1} parent=5 // pred_region
        %s615 = ssub.s32 %s15, 2
        // Predicated region
        $region53: #{tpu_custom_call.1} parent=51 // pred_check
          %p616 = pneg %p198
        $region54: #{tpu_custom_call.1} parent=51 // pred_check_branch
          %618 = sbr.rel (%p616) target = $region56
        $region55: #{tpu_custom_call.1} parent=51 // pred_region
          %s619 = sand.u32 %s183, 1
          %s620 = scalar_lea.sflag [#allocation3], %s619
          %s621 = sand.u32 %s183, 1
          %s622 = smul.addr %s621, 16
          %s623 = scalar_lea.vmem [#allocation2], %s622
          %624 = dma.done %s620, 256
        $region56: #{tpu_custom_call.1} parent=51 // pred_fallthru
          _
      $region52: #{tpu_custom_call.1} parent=5 // pred_fallthru
        _
    $region6: #{tpu_custom_call.1} parent=1 // loop_footer
      %s19 = sadd.s32 1, %s15
    $region7: #{tpu_custom_call.1} parent=1 // loop_footer_branch
      %14 = sbr.rel target = $region3
    $region8: #{tpu_custom_call.1} parent=1 // loop_exit
      _
    %625 = vsyncpa [#allocation3], 1
    %s626 = scalar_lea.sflag [#allocation3], 1
    %627 = vsyncpa %s626, 1

</llo_original>
